<compile_context>
chip_gen: v5e
topology: v5e:2x2
jax: 0.10.0
libtpu: 0.0.40
codegen_flags: <defaults>
</compile_context>

<pallas_src>
import functools

import jax
import jax.numpy as jnp
from jax.experimental import pallas as pl
from jax.experimental.pallas import tpu as pltpu


def _dice_partials_kernel(
    x_ref, t_ref, out_ref, *, num_classes, total_rows, tr, has_tail
):
    """One grid step: reduce a (C, TR, lane) logit tile + (TR, lane) target tile
    to [intersection, sum(sigmoid), sum(one-hot)] and store them as one
    lane-dense (8, 128) partial block.

    x_ref:   (1, C, TR, lane) logits tile (native dtype, upcast in-kernel)
    t_ref:   (1, 1, TR, lane) integer target tile (native dtype, upcast in-kernel)
    out_ref: (1, 1, 8, 128)   f32 per-(n, tile) partials
    """
    r = pl.program_id(1)

    def compute(mask_rows):
        x = x_ref[0].astype(jnp.float32)            # (C, TR, lane)
        t = t_ref[0, 0]                             # (TR, lane) native int dtype
        if t.dtype != jnp.int32:
            t = t.astype(jnp.int32)                 # upcast narrow targets in-kernel

        # sigmoid via a single EUP tanh (no full-precision divide).
        s = 0.5 * jnp.tanh(0.5 * x) + 0.5           # (C, TR, lane)
        in_range = (t >= 0) & (t < num_classes)     # (TR, lane)

        if mask_rows:
            # Only the ragged last tile pays for this (pl.when-gated below).
            row = jax.lax.broadcasted_iota(jnp.int32, t.shape, 0) + r * tr
            valid = row < total_rows                # (TR, lane)
            in_range = in_range & valid
            s = jnp.where(valid[None], s, 0.0)      # padded rows contribute nothing

        s_tot = jnp.sum(s)
        c_tot = jnp.sum(in_range.astype(jnp.float32))

        # Unrolled per-channel one-hot: compare targets against a scalar class id
        # (avoids materializing a (C, TR, lane) channel iota each step).
        i_tot = jnp.zeros((), jnp.float32)
        for c in range(num_classes):
            i_tot = i_tot + jnp.sum(jnp.where(t == c, s[c], 0.0))

        # Single unmasked (8, 128) store of the three partials (rows 0..2).
        rowid = jax.lax.broadcasted_iota(jnp.int32, (8, 128), 0)
        part = jnp.where(
            rowid == 0, i_tot,
            jnp.where(rowid == 1, s_tot, jnp.where(rowid == 2, c_tot, 0.0)),
        )
        out_ref[0, 0] = part

    if has_tail:
        last = pl.num_programs(1) - 1

        @pl.when(r < last)
        def _():
            compute(False)          # fast path: no masking work

        @pl.when(r == last)
        def _():
            compute(True)           # slow path: mask overhanging rows
    else:
        compute(False)


def dice_loss(inputs, targets, smooth=1.0, block_rows=None):
    """Pallas implementation of DiceLoss.forward.

    inputs:  (N, C, H, W) float logits (float32 or bfloat16; upcast in-kernel)
    targets: (N, H, W) integer class map (any integer dtype; upcast in-kernel)
    """
    N, C, H, W = inputs.shape
    L = H * W

    # Lane-dense flattened view whenever possible (free contiguous reshape).
    if L % 128 == 0:
        lane = 128
        total_rows = L // 128
    else:
        lane = W            # fallback: native layout, W is the lane dim
        total_rows = H
    x = inputs.reshape(N, C, total_rows, lane)
    t = targets.reshape(N, 1, total_rows, lane)

    bx = jnp.dtype(inputs.dtype).itemsize
    bt = jnp.dtype(targets.dtype).itemsize

    # Generation-aware VMEM sizing (v7x: 64 MiB/TC, v5e/v6e: 128 MiB).
    try:
        vmem_cap = int(pltpu.get_tpu_info().vmem_capacity_bytes)
    except Exception:
        vmem_cap = 64 * 1024 * 1024
    # Target footprint for the double-buffered streamed tiles, with headroom.
    budget = max(16 << 20, min(vmem_cap - (16 << 20), 96 << 20))

    if block_rows is None:
        per_row = 2 * lane * (C * bx + bt)   # bytes / tile-row incl. double buffers
        tr = max(8, (budget // per_row) // 8 * 8)
    else:
        tr = block_rows
    if tr >= total_rows:
        tr = total_rows
    else:
        assert tr % 8 == 0, "block_rows must be a multiple of 8 (or >= total rows)"

    n_r = pl.cdiv(total_rows, tr)
    has_tail = (total_rows % tr) != 0

    footprint = 2 * tr * lane * (C * bx + bt) + 2 * 8 * 128 * 4
    vmem_limit = int(min(vmem_cap - (8 << 20), max(32 << 20, footprint + (16 << 20))))

    kernel = functools.partial(
        _dice_partials_kernel,
        num_classes=C, total_rows=total_rows, tr=tr, has_tail=has_tail,
    )

    partials = pl.pallas_call(
        kernel,
        out_shape=jax.ShapeDtypeStruct((N, n_r, 8, 128), jnp.float32),
        grid_spec=pltpu.PrefetchScalarGridSpec(
            num_scalar_prefetch=0,
            grid=(N, n_r),
            in_specs=[
                pl.BlockSpec((1, C, tr, lane), lambda n, r: (n, 0, r, 0)),
                pl.BlockSpec((1, 1, tr, lane), lambda n, r: (n, 0, r, 0)),
            ],
            out_specs=pl.BlockSpec((1, 1, 8, 128), lambda n, r: (n, r, 0, 0)),
        ),
        compiler_params=pltpu.CompilerParams(
            dimension_semantics=("parallel", "parallel"),
            vmem_limit_bytes=vmem_limit,
        ),
    )(x, t)

    # Tiny finish in JAX: every lane of rows 0..2 of each partial holds the same
    # scalar; sum the per-(n, tile) partials and apply the dice formula.
    tot = jnp.sum(partials[:, :, :3, 0], axis=(0, 1))   # (3,)
    intersection, inputs_sum, targets_sum = tot[0], tot[1], tot[2]
    dice = (2.0 * intersection + smooth) / (inputs_sum + targets_sum + smooth)
    return 1.0 - dice


def dice_loss_ref(inputs, targets, smooth=1.0):
    """Pure-JAX reference mirroring the PyTorch forward exactly."""
    N, C, H, W = inputs.shape
    s = jax.nn.sigmoid(inputs.astype(jnp.float32))
    onehot = (targets[:, None, :, :] == jnp.arange(C)[None, :, None, None]).astype(
        jnp.float32
    )
    inter = jnp.sum(s * onehot)
    dice = (2.0 * inter + smooth) / (jnp.sum(s) + jnp.sum(onehot) + smooth)
    return 1.0 - dice


if __name__ == "__main__":
    # DiceLoss has no learnable parameters (__init__ ignores weight/size_average).
    key = jax.random.PRNGKey(0)
    k1, k2, k3, k4 = jax.random.split(key, 4)

    # Check 1: lane-dense flattened path (H*W % 128 == 0), single tile per n.
    N, C, H, W = 2, 4, 16, 16
    inputs = jax.random.normal(k1, (N, C, H, W), dtype=jnp.float32)
    targets = jax.random.randint(k2, (N, H, W), 0, C, dtype=jnp.int32)
    out = jax.block_until_ready(dice_loss(inputs, targets, smooth=1.0))
    ref = dice_loss_ref(inputs, targets, smooth=1.0)
    assert jnp.allclose(out, ref, atol=1e-5, rtol=1e-5), (out, ref)

    # Check 2: fallback (W-lane) layout, forced small row tile, ragged last tile
    # (exercises the pl.when-gated masking path).
    N2, C2, H2, W2 = 2, 3, 20, 16
    inputs2 = jax.random.normal(k3, (N2, C2, H2, W2), dtype=jnp.float32)
    targets2 = jax.random.randint(k4, (N2, H2, W2), 0, C2, dtype=jnp.int32)
    out2 = jax.block_until_ready(dice_loss(inputs2, targets2, smooth=1.0, block_rows=8))
    ref2 = dice_loss_ref(inputs2, targets2, smooth=1.0)
    assert jnp.allclose(out2, ref2, atol=1e-5, rtol=1e-5), (out2, ref2)

    # Check 3: bf16 logits passed straight through (no wrapper cast; in-kernel upcast).
    inputs_bf16 = inputs.astype(jnp.bfloat16)
    out3 = jax.block_until_ready(dice_loss(inputs_bf16, targets, smooth=1.0))
    ref3 = dice_loss_ref(inputs_bf16, targets, smooth=1.0)
    assert jnp.allclose(out3, ref3, atol=1e-5, rtol=1e-5), (out3, ref3)

    print("KERNEL_OK")
</pallas_src>

<mosaic_0001>
module attributes {stable_mosaic.version = 11 : i64} {
  func.func @_dice_partials_kernel(%arg0: i32, %arg1: i32, %arg2: memref<1x4x2x128xf32, #tpu.memory_space<vmem>>, %arg3: memref<1x1x2x128xi32, #tpu.memory_space<vmem>>, %arg4: memref<1x1x8x128xf32, #tpu.memory_space<vmem>>) attributes {dimension_semantics = [#tpu.dimension_semantics<parallel>, #tpu.dimension_semantics<parallel>], iteration_bounds = array<i64: 2, 1>, scalar_prefetch = 0 : i64, scratch_operands = 0 : i64, tpu.core_type = #tpu.core_type<tc>, window_params = [{transform_indices = @transform_0, window_bounds = array<i64: 1, 4, 2, 128>}, {transform_indices = @transform_1, window_bounds = array<i64: 1, 1, 2, 128>}, {transform_indices = @transform_2, window_bounds = array<i64: 1, 1, 8, 128>}]} {
    %c0 = arith.constant 0 : index
    %c0_0 = arith.constant 0 : index
    %c0_1 = arith.constant 0 : index
    %c0_2 = arith.constant 0 : index
    %0 = vector.load %arg2[%c0, %c0_0, %c0_1, %c0_2] : memref<1x4x2x128xf32, #tpu.memory_space<vmem>>, vector<1x4x2x128xf32>
    %1 = vector.shape_cast %0 : vector<1x4x2x128xf32> to vector<4x2x128xf32>
    %c0_3 = arith.constant 0 : index
    %c0_4 = arith.constant 0 : index
    %c0_5 = arith.constant 0 : index
    %c0_6 = arith.constant 0 : index
    %2 = vector.load %arg3[%c0_3, %c0_4, %c0_5, %c0_6] : memref<1x1x2x128xi32, #tpu.memory_space<vmem>>, vector<1x1x2x128xi32>
    %3 = vector.shape_cast %2 : vector<1x1x2x128xi32> to vector<2x128xi32>
    %cst = arith.constant 5.000000e-01 : f32
    %4 = vector.broadcast %cst : f32 to vector<4x2x128xf32>
    %5 = arith.mulf %4, %1 : vector<4x2x128xf32>
    %6 = math.tanh %5 : vector<4x2x128xf32>
    %cst_7 = arith.constant 5.000000e-01 : f32
    %7 = vector.broadcast %cst_7 : f32 to vector<4x2x128xf32>
    %8 = arith.mulf %7, %6 : vector<4x2x128xf32>
    %cst_8 = arith.constant 5.000000e-01 : f32
    %9 = vector.broadcast %cst_8 : f32 to vector<4x2x128xf32>
    %10 = arith.addf %8, %9 : vector<4x2x128xf32>
    %c0_i32 = arith.constant 0 : i32
    %11 = vector.broadcast %c0_i32 : i32 to vector<2x128xi32>
    %12 = arith.cmpi sge, %3, %11 : vector<2x128xi32>
    %c4_i32 = arith.constant 4 : i32
    %13 = vector.broadcast %c4_i32 : i32 to vector<2x128xi32>
    %14 = arith.cmpi slt, %3, %13 : vector<2x128xi32>
    %15 = arith.andi %12, %14 : vector<2x128xi1>
    %16 = vector.shape_cast %10 : vector<4x2x128xf32> to vector<1x4x2x128xf32>
    %cst_9 = arith.constant dense<0.000000e+00> : vector<1xf32>
    %17 = vector.multi_reduction <add>, %16, %cst_9 [1, 2, 3] : vector<1x4x2x128xf32> to vector<1xf32>
    %18 = vector.shape_cast %17 : vector<1xf32> to vector<1x1x1x1xf32>
    %19 = vector.extract %18[0, 0, 0, 0] : f32 from vector<1x1x1x1xf32>
    %20 = arith.extui %15 : vector<2x128xi1> to vector<2x128xi32>
    %21 = arith.sitofp %20 : vector<2x128xi32> to vector<2x128xf32>
    %22 = vector.shape_cast %21 : vector<2x128xf32> to vector<1x2x128xf32>
    %cst_10 = arith.constant dense<0.000000e+00> : vector<1xf32>
    %23 = vector.multi_reduction <add>, %22, %cst_10 [1, 2] : vector<1x2x128xf32> to vector<1xf32>
    %24 = vector.shape_cast %23 : vector<1xf32> to vector<1x1x1xf32>
    %25 = vector.extract %24[0, 0, 0] : f32 from vector<1x1x1xf32>
    %c0_i32_11 = arith.constant 0 : i32
    %26 = vector.broadcast %c0_i32_11 : i32 to vector<2x128xi32>
    %27 = arith.cmpi eq, %3, %26 : vector<2x128xi32>
    %28 = vector.extract_strided_slice %10 {offsets = [0, 0, 0], sizes = [1, 2, 128], strides = [1, 1, 1]} : vector<4x2x128xf32> to vector<1x2x128xf32>
    %29 = vector.shape_cast %28 : vector<1x2x128xf32> to vector<2x128xf32>
    %cst_12 = arith.constant 0.000000e+00 : f32
    %30 = vector.broadcast %cst_12 : f32 to vector<2x128xf32>
    %31 = arith.select %27, %29, %30 : vector<2x128xi1>, vector<2x128xf32>
    %32 = vector.shape_cast %31 : vector<2x128xf32> to vector<1x2x128xf32>
    %cst_13 = arith.constant dense<0.000000e+00> : vector<1xf32>
    %33 = vector.multi_reduction <add>, %32, %cst_13 [1, 2] : vector<1x2x128xf32> to vector<1xf32>
    %34 = vector.shape_cast %33 : vector<1xf32> to vector<1x1x1xf32>
    %35 = vector.extract %34[0, 0, 0] : f32 from vector<1x1x1xf32>
    %cst_14 = arith.constant 0.000000e+00 : f32
    %36 = arith.addf %cst_14, %35 : f32
    %c1_i32 = arith.constant 1 : i32
    %37 = vector.broadcast %c1_i32 : i32 to vector<2x128xi32>
    %38 = arith.cmpi eq, %3, %37 : vector<2x128xi32>
    %39 = vector.extract_strided_slice %10 {offsets = [1, 0, 0], sizes = [1, 2, 128], strides = [1, 1, 1]} : vector<4x2x128xf32> to vector<1x2x128xf32>
    %40 = vector.shape_cast %39 : vector<1x2x128xf32> to vector<2x128xf32>
    %cst_15 = arith.constant 0.000000e+00 : f32
    %41 = vector.broadcast %cst_15 : f32 to vector<2x128xf32>
    %42 = arith.select %38, %40, %41 : vector<2x128xi1>, vector<2x128xf32>
    %43 = vector.shape_cast %42 : vector<2x128xf32> to vector<1x2x128xf32>
    %cst_16 = arith.constant dense<0.000000e+00> : vector<1xf32>
    %44 = vector.multi_reduction <add>, %43, %cst_16 [1, 2] : vector<1x2x128xf32> to vector<1xf32>
    %45 = vector.shape_cast %44 : vector<1xf32> to vector<1x1x1xf32>
    %46 = vector.extract %45[0, 0, 0] : f32 from vector<1x1x1xf32>
    %47 = arith.addf %36, %46 : f32
    %c2_i32 = arith.constant 2 : i32
    %48 = vector.broadcast %c2_i32 : i32 to vector<2x128xi32>
    %49 = arith.cmpi eq, %3, %48 : vector<2x128xi32>
    %50 = vector.extract_strided_slice %10 {offsets = [2, 0, 0], sizes = [1, 2, 128], strides = [1, 1, 1]} : vector<4x2x128xf32> to vector<1x2x128xf32>
    %51 = vector.shape_cast %50 : vector<1x2x128xf32> to vector<2x128xf32>
    %cst_17 = arith.constant 0.000000e+00 : f32
    %52 = vector.broadcast %cst_17 : f32 to vector<2x128xf32>
    %53 = arith.select %49, %51, %52 : vector<2x128xi1>, vector<2x128xf32>
    %54 = vector.shape_cast %53 : vector<2x128xf32> to vector<1x2x128xf32>
    %cst_18 = arith.constant dense<0.000000e+00> : vector<1xf32>
    %55 = vector.multi_reduction <add>, %54, %cst_18 [1, 2] : vector<1x2x128xf32> to vector<1xf32>
    %56 = vector.shape_cast %55 : vector<1xf32> to vector<1x1x1xf32>
    %57 = vector.extract %56[0, 0, 0] : f32 from vector<1x1x1xf32>
    %58 = arith.addf %47, %57 : f32
    %c3_i32 = arith.constant 3 : i32
    %59 = vector.broadcast %c3_i32 : i32 to vector<2x128xi32>
    %60 = arith.cmpi eq, %3, %59 : vector<2x128xi32>
    %61 = vector.extract_strided_slice %10 {offsets = [3, 0, 0], sizes = [1, 2, 128], strides = [1, 1, 1]} : vector<4x2x128xf32> to vector<1x2x128xf32>
    %62 = vector.shape_cast %61 : vector<1x2x128xf32> to vector<2x128xf32>
    %cst_19 = arith.constant 0.000000e+00 : f32
    %63 = vector.broadcast %cst_19 : f32 to vector<2x128xf32>
    %64 = arith.select %60, %62, %63 : vector<2x128xi1>, vector<2x128xf32>
    %65 = vector.shape_cast %64 : vector<2x128xf32> to vector<1x2x128xf32>
    %cst_20 = arith.constant dense<0.000000e+00> : vector<1xf32>
    %66 = vector.multi_reduction <add>, %65, %cst_20 [1, 2] : vector<1x2x128xf32> to vector<1xf32>
    %67 = vector.shape_cast %66 : vector<1xf32> to vector<1x1x1xf32>
    %68 = vector.extract %67[0, 0, 0] : f32 from vector<1x1x1xf32>
    %69 = arith.addf %58, %68 : f32
    %70 = tpu.iota {dimensions = array<i32: 0>} : vector<8x128xi32>
    %c0_i32_21 = arith.constant 0 : i32
    %71 = vector.broadcast %c0_i32_21 : i32 to vector<8x128xi32>
    %72 = arith.cmpi eq, %70, %71 : vector<8x128xi32>
    %c1_i32_22 = arith.constant 1 : i32
    %73 = vector.broadcast %c1_i32_22 : i32 to vector<8x128xi32>
    %74 = arith.cmpi eq, %70, %73 : vector<8x128xi32>
    %c2_i32_23 = arith.constant 2 : i32
    %75 = vector.broadcast %c2_i32_23 : i32 to vector<8x128xi32>
    %76 = arith.cmpi eq, %70, %75 : vector<8x128xi32>
    %cst_24 = arith.constant 0.000000e+00 : f32
    %77 = vector.broadcast %25 : f32 to vector<8x128xf32>
    %78 = vector.broadcast %cst_24 : f32 to vector<8x128xf32>
    %79 = arith.select %76, %77, %78 : vector<8x128xi1>, vector<8x128xf32>
    %80 = vector.broadcast %19 : f32 to vector<8x128xf32>
    %81 = arith.select %74, %80, %79 : vector<8x128xi1>, vector<8x128xf32>
    %82 = vector.broadcast %69 : f32 to vector<8x128xf32>
    %83 = arith.select %72, %82, %81 : vector<8x128xi1>, vector<8x128xf32>
    %c0_25 = arith.constant 0 : index
    %c0_26 = arith.constant 0 : index
    %c0_27 = arith.constant 0 : index
    %c0_28 = arith.constant 0 : index
    %84 = vector.load %arg4[%c0_25, %c0_26, %c0_27, %c0_28] : memref<1x1x8x128xf32, #tpu.memory_space<vmem>>, vector<1x1x8x128xf32>
    %85 = vector.shape_cast %84 : vector<1x1x8x128xf32> to vector<8x128xf32>
    %86 = vector.shape_cast %83 : vector<8x128xf32> to vector<1x1x8x128xf32>
    tpu.vector_store %arg4[%c0_25, %c0_26, %c0_27, %c0_28], %86 {strides = array<i32>} : memref<1x1x8x128xf32, #tpu.memory_space<vmem>>, vector<1x1x8x128xf32>,
    return
  }
  func.func @transform_0(%arg0: i32, %arg1: i32) -> (i32, i32, i32, i32) {
    %c0_i32 = arith.constant 0 : i32
    %c0_i32_0 = arith.constant 0 : i32
    %c0_i32_1 = arith.constant 0 : i32
    return %arg0, %c0_i32, %arg1, %c0_i32_0 : i32, i32, i32, i32
  }
  func.func @transform_1(%arg0: i32, %arg1: i32) -> (i32, i32, i32, i32) {
    %c0_i32 = arith.constant 0 : i32
    %c0_i32_0 = arith.constant 0 : i32
    %c0_i32_1 = arith.constant 0 : i32
    return %arg0, %c0_i32, %arg1, %c0_i32_0 : i32, i32, i32, i32
  }
  func.func @transform_2(%arg0: i32, %arg1: i32) -> (i32, i32, i32, i32) {
    %c0_i32 = arith.constant 0 : i32
    %c0_i32_0 = arith.constant 0 : i32
    %c0_i32_1 = arith.constant 0 : i32
    return %arg0, %arg1, %c0_i32, %c0_i32_0 : i32, i32, i32, i32
  }
}

</mosaic_0001>

<llo_original>
// kernel: tpu_custom_call.1
$region0: #{tpu_custom_call.1}
  #allocation0 [shape = 'u32[]', space=smem, size = 0x4, offset = 0x4, fixed_abs, tag = 'smem constant byte address 0x4 - core index']
  #allocation1 [shape = 'u32[72,128]{1,0:T(1,128)}', space=vmem, size = 0x9000, scoped, tag = 'internal scratch']
  %s0 = inlined_call_operand.hbm [shape: f32[2,4,2,128], index: 0, kind: input, shape index: {}]
  %s1 = inlined_call_operand.hbm [shape: s32[2,1,2,128], index: 1, kind: input, shape index: {}]
  %s2 = inlined_call_operand.hbm [shape: f32[2,1,8,128], index: 2, kind: output, shape index: {}]
  %s3 = sld [smem:[#allocation0]]
  $region49: #{tpu_custom_call.1} parent=0
    _
  %s5 = ssub.s32 1, %s3
  %s6 = scalar_select 0, %s5, %s3
  $region1: #{tpu_custom_call.1} parent=0
    #allocation2 [shape = 'u8[8192]{0}', space=vmem, size = 0x2000, scoped, tag = 'input window, operand 0']
    #allocation3 [shape = 's32[2]{0}', space=sflag, size = 0x8, scoped, tag = 'scoped memory for tpu_custom_call.1']
    #allocation4 [shape = 's32[2]{0}', space=sflag, size = 0x8, scoped, tag = 'scoped memory for tpu_custom_call.1']
    #allocation5 [shape = 'u8[2048]{0}', space=vmem, size = 0x800, scoped, tag = 'input window, operand 1']
    #allocation6 [shape = 's32[2]{0}', space=sflag, size = 0x8, scoped, tag = 'scoped memory for tpu_custom_call.1']
    #allocation7 [shape = 'u8[8192]{0}', space=vmem, size = 0x2000, scoped, tag = 'output window, operand 0']
    %7 = vsyncpa [#allocation3], 0
    %s8 = scalar_lea.sflag [#allocation3], 1
    %9 = vsyncpa %s8, 0
    %10 = vsyncpa [#allocation6], 0
    %s11 = scalar_lea.sflag [#allocation6], 1
    %12 = vsyncpa %s11, 0
    %13 = vsyncpa [#allocation4], 0
    %s14 = scalar_lea.sflag [#allocation4], 1
    %15 = vsyncpa %s14, 0
    loop: start=0, step=1, limit=4
    $region2: #{tpu_custom_call.1} parent=1 // loop_pre_header
      _
    $region3: #{tpu_custom_call.1} parent=1 // loop_header
      %s17 = sphi 0, %s21
      %p18 = scmp.ge.s32.totalorder %s17, 4
      %s24 = sphi 0, %s36
      %s25 = sphi 0, %s32
      %s26 = sphi 0, %s24
      %s27 = sphi 0, %s25
      %s28 = sphi 0, %s26
      %s29 = sphi 0, %s27
      %s41 = sphi 0, %s43
      %s44 = sphi 0, %s41
      %s45 = sphi 0, %s44
      %s61 = sphi 0, %s45
      %s69 = sphi 0, %s71
      %s72 = sphi 0, %s69
      %s73 = sphi 0, %s72
      %s89 = sphi 0, %s73
      %s97 = sphi 0, %s99
      %s100 = sphi 0, %s97
      %s101 = sphi 0, %s100
      %s117 = sphi 0, %s101
    $region4: #{tpu_custom_call.1} parent=1 // loop_header_branch
      %20 = sbr.rel (%p18) target = $region8
    $region5: #{tpu_custom_call.1} parent=1 // loop_body
      %s22 = ssub.s32 %s17, 1
      %s23 = ssub.s32 %s17, 2
      %s30 = sadd.s32 1, %s25
      %p31 = scmp.ge.s32.totalorder %s30, 1
      %s32 = scalar_select %p31, 0, %s30
      %s33 = sadd.s32 1, %s24
      %s34 = scalar_select %p31, %s33, %s24
      %p35 = scmp.ge.s32.totalorder %s34, 2
      %s36 = scalar_select %p35, 0, %s34
      %s37 = ssub.s32 %s24, %s36
      %s38 = ssub.s32 %s25, %s32
      %s39 = sor.u32 %s37, %s38
      %p40 = scmp.eq.s32.totalorder %s39, 0
      %s42 = sadd.s32 %s41, 1
      %s43 = scalar_select %p40, %s41, %s42
      %p46 = pneg %p40
      %p47 = scmp.eq.s32.totalorder %s17, 1
      %p48 = por %p46, %p47
      %p49 = scmp.ne.s32.totalorder %s41, %s44
      %p50 = scmp.eq.s32.totalorder %s17, 0
      %p51 = por %p49, %p50
      %p52 = scmp.ne.s32.totalorder %s41, %s44
      %p53 = scmp.eq.s32.totalorder %s22, 1
      %p54 = por %p52, %p53
      %p55 = scmp.ne.s32.totalorder %s44, %s45
      %p56 = scmp.eq.s32.totalorder %s22, 0
      %p57 = por %p55, %p56
      %p58 = scmp.ne.s32.totalorder %s44, %s45
      %p59 = scmp.eq.s32.totalorder %s23, 1
      %p60 = por %p58, %p59
      %p62 = scmp.ne.s32.totalorder %s45, %s61
      %p63 = scmp.eq.s32.totalorder %s23, 0
      %p64 = por %p62, %p63
      %s65 = ssub.s32 %s24, %s36
      %s66 = ssub.s32 %s25, %s32
      %s67 = sor.u32 %s65, %s66
      %p68 = scmp.eq.s32.totalorder %s67, 0
      %s70 = sadd.s32 %s69, 1
      %s71 = scalar_select %p68, %s69, %s70
      %p74 = pneg %p68
      %p75 = scmp.eq.s32.totalorder %s17, 1
      %p76 = por %p74, %p75
      %p77 = scmp.ne.s32.totalorder %s69, %s72
      %p78 = scmp.eq.s32.totalorder %s17, 0
      %p79 = por %p77, %p78
      %p80 = scmp.ne.s32.totalorder %s69, %s72
      %p81 = scmp.eq.s32.totalorder %s22, 1
      %p82 = por %p80, %p81
      %p83 = scmp.ne.s32.totalorder %s72, %s73
      %p84 = scmp.eq.s32.totalorder %s22, 0
      %p85 = por %p83, %p84
      %p86 = scmp.ne.s32.totalorder %s72, %s73
      %p87 = scmp.eq.s32.totalorder %s23, 1
      %p88 = por %p86, %p87
      %p90 = scmp.ne.s32.totalorder %s73, %s89
      %p91 = scmp.eq.s32.totalorder %s23, 0
      %p92 = por %p90, %p91
      %s93 = ssub.s32 %s24, %s36
      %s94 = ssub.s32 %s25, %s32
      %s95 = sor.u32 %s93, %s94
      %p96 = scmp.eq.s32.totalorder %s95, 0
      %s98 = sadd.s32 %s97, 1
      %s99 = scalar_select %p96, %s97, %s98
      %p102 = pneg %p96
      %p103 = scmp.eq.s32.totalorder %s17, 1
      %p104 = por %p102, %p103
      %p105 = scmp.ne.s32.totalorder %s97, %s100
      %p106 = scmp.eq.s32.totalorder %s17, 0
      %p107 = por %p105, %p106
      %p108 = scmp.ne.s32.totalorder %s97, %s100
      %p109 = scmp.eq.s32.totalorder %s22, 1
      %p110 = por %p108, %p109
      %p111 = scmp.ne.s32.totalorder %s100, %s101
      %p112 = scmp.eq.s32.totalorder %s22, 0
      %p113 = por %p111, %p112
      %p114 = scmp.ne.s32.totalorder %s100, %s101
      %p115 = scmp.eq.s32.totalorder %s23, 1
      %p116 = por %p114, %p115
      %p118 = scmp.ne.s32.totalorder %s101, %s117
      %p119 = scmp.eq.s32.totalorder %s23, 0
      %p120 = por %p118, %p119
      %p121 = scmp.le.s32.totalorder 1, %s17
      %p122 = scmp.lt.s32.totalorder %s17, 3
      %p123 = pnand %p121, %p122
      %p124 = pneg %p123
      // Predicated region
      $region9: #{tpu_custom_call.1} parent=5 // pred_check
        _
      $region10: #{tpu_custom_call.1} parent=5 // pred_check_branch
        %126 = sbr.rel (%p123) target = $region12
      $region11: #{tpu_custom_call.1} parent=5 // pred_region
        %s127 = ssub.s32 %s17, 1
      $region12: #{tpu_custom_call.1} parent=5 // pred_fallthru
        _
      %p128 = scmp.lt.s32.totalorder %s17, 2
      // Predicated region
      $region13: #{tpu_custom_call.1} parent=5 // pred_check
        %p129 = pneg %p128
      $region14: #{tpu_custom_call.1} parent=5 // pred_check_branch
        %131 = sbr.rel (%p129) target = $region16
      $region15: #{tpu_custom_call.1} parent=5 // pred_region
        // Predicated region
        $region17: #{tpu_custom_call.1} parent=15 // pred_check
          %p132 = pneg %p51
        $region18: #{tpu_custom_call.1} parent=15 // pred_check_branch
          %134 = sbr.rel (%p132) target = $region20
        $region19: #{tpu_custom_call.1} parent=15 // pred_region
          %s135 = sand.u32 %s41, 1
          %s136 = scalar_lea.sflag [#allocation3], %s135
          %s137 = sand.u32 %s41, 1
          %s138 = smul.addr %s137, 8
          %s139 = scalar_lea.vmem [#allocation2], %s138
          %141 = vsyncadd %s136, 0
          %s142 = smul.addr %s24, 4
          %s143 = sadd.s32 %s25, %s142
          %s144 = smul.addr %s143, 2
          %s145 = scalar_lea.hbm %s0, %s144
          %s146 = sshll.u32 %s145, 4
          %s147 = int_to_ptr.hbm [resolvable:$true] %s146
          %s148 = sshll.u32 %s139, 4
          %s149 = int_to_ptr.vmem [resolvable:$true] %s148
          %154 = dma.hbm_to_vmem [thread:$0]  %s147, 128, %s149, %s136, 32, 32, 2
        $region20: #{tpu_custom_call.1} parent=15 // pred_fallthru
          _
        // Predicated region
        $region21: #{tpu_custom_call.1} parent=15 // pred_check
          %p155 = pneg %p79
        $region22: #{tpu_custom_call.1} parent=15 // pred_check_branch
          %157 = sbr.rel (%p155) target = $region24
        $region23: #{tpu_custom_call.1} parent=15 // pred_region
          %s158 = sand.u32 %s69, 1
          %s159 = scalar_lea.sflag [#allocation6], %s158
          %s160 = sand.u32 %s69, 1
          %s161 = smul.addr %s160, 2
          %s162 = scalar_lea.vmem [#allocation5], %s161
          %164 = vsyncadd %s159, 0
          %s165 = sadd.s32 %s25, %s24
          %s166 = smul.addr %s165, 2
          %s167 = scalar_lea.hbm %s1, %s166
          %s169 = sshll.u32 %s167, 4
          %s170 = int_to_ptr.hbm [resolvable:$true] %s169
          %s171 = sshll.u32 %s162, 4
          %s172 = int_to_ptr.vmem [resolvable:$true] %s171
          %174 = dma.hbm_to_vmem [thread:$0]  %s170, 32, %s172, %s159
        $region24: #{tpu_custom_call.1} parent=15 // pred_fallthru
          _
      $region16: #{tpu_custom_call.1} parent=5 // pred_fallthru
        _
      %p175 = scmp.le.s32.totalorder 1, %s17
      %p176 = scmp.lt.s32.totalorder %s17, 3
      %p177 = pnand %p175, %p176
      %p178 = pneg %p177
      // Predicated region
      $region25: #{tpu_custom_call.1} parent=5 // pred_check
        _
      $region26: #{tpu_custom_call.1} parent=5 // pred_check_branch
        %180 = sbr.rel (%p177) target = $region28
      $region27: #{tpu_custom_call.1} parent=5 // pred_region
        %s181 = ssub.s32 %s17, 1
        %s182 = sand.u32 %s44, 1
        %s183 = scalar_lea.sflag [#allocation3], %s182
        %s184 = sand.u32 %s44, 1
        %s185 = smul.addr %s184, 8
        %s186 = scalar_lea.vmem [#allocation2], %s185
        // Predicated region
        $region29: #{tpu_custom_call.1} parent=27 // pred_check
          %p187 = pneg %p57
        $region30: #{tpu_custom_call.1} parent=27 // pred_check_branch
          %189 = sbr.rel (%p187) target = $region32
        $region31: #{tpu_custom_call.1} parent=27 // pred_region
          %191 = dma.done %s183, 128
        $region32: #{tpu_custom_call.1} parent=27 // pred_fallthru
          _
        %s192 = sand.u32 %s72, 1
        %s193 = scalar_lea.sflag [#allocation6], %s192
        %s194 = sand.u32 %s72, 1
        %s195 = smul.addr %s194, 2
        %s196 = scalar_lea.vmem [#allocation5], %s195
        // Predicated region
        $region33: #{tpu_custom_call.1} parent=27 // pred_check
          %p197 = pneg %p85
        $region34: #{tpu_custom_call.1} parent=27 // pred_check_branch
          %199 = sbr.rel (%p197) target = $region36
        $region35: #{tpu_custom_call.1} parent=27 // pred_region
          %201 = dma.done %s193, 32
        $region36: #{tpu_custom_call.1} parent=27 // pred_fallthru
          _
        %s202 = sand.u32 %s44, 1
        %s203 = scalar_lea.sflag [#allocation3], %s202
        %s204 = sand.u32 %s44, 1
        %s205 = smul.addr %s204, 8
        %s206 = scalar_lea.vmem [#allocation2], %s205
        %p207 = pneg %p57
        %p208 = pneg %p54
        %s209 = sand.u32 %s72, 1
        %s210 = scalar_lea.sflag [#allocation6], %s209
        %s211 = sand.u32 %s72, 1
        %s212 = smul.addr %s211, 2
        %s213 = scalar_lea.vmem [#allocation5], %s212
        %p214 = pneg %p85
        %p215 = pneg %p82
        %p216 = pneg %p113
        %p217 = pneg %p110
        %s218 = sand.u32 %s100, 1
        %s219 = scalar_lea.sflag [#allocation4], %s218
        %s220 = sand.u32 %s100, 1
        %s221 = smul.addr %s220, 8
        %s222 = scalar_lea.vmem [#allocation7], %s221
        %v223 = vld [vmem:[%s186] sm:$0x3]
        %v224 = vld [vmem:[%s186 + $0x2] sm:$0x3]
        %v225 = vld [vmem:[%s186 + $0x4] sm:$0x3]
        %v226 = vld [vmem:[%s186 + $0x6] sm:$0x3]
        %v227 = vld [vmem:[%s196] sm:$0x3]
        %v228 = vmul.f32 %v223, 0.5
        %v229 = vmul.f32 %v224, 0.5
        %v230 = vmul.f32 %v225, 0.5
        %v231 = vmul.f32 %v226, 0.5
        %v232 = vtanh.pop %v228
        %v233 = vtanh.pop %v229
        %v234 = vtanh.pop %v230
        %v235 = vtanh.pop %v231
        %v236 = vmul.f32 %v232, 0.5
        %v237 = vmul.f32 %v233, 0.5
        %v238 = vmul.f32 %v234, 0.5
        %v239 = vmul.f32 %v235, 0.5
        %v240 = vadd.f32 %v236, 0.5
        %v241 = vadd.f32 %v237, 0.5
        %v242 = vadd.f32 %v238, 0.5
        %v243 = vadd.f32 %v239, 0.5
        %vm244 = vcmp.ge.s32.totalorder %v227, 0
        %vm245 = vcmp.lt.s32.totalorder %v227, 4
        %vm246 = vmand %vm244, %vm245
        %vm247 = vcmask 1041408
        %v248 = vsel %vm247, %v240, 0.0
        %v249 = vsel %vm247, %v241, 0.0
        %v250 = vadd.f32 %v248, %v249
        %v251 = vsel %vm247, %v242, 0.0
        %v252 = vadd.f32 %v250, %v251
        %v253 = vsel %vm247, %v243, 0.0
        %v254 = vadd.f32 %v252, %v253
        %255 = vadd.xlane.f32.xlu0 %v254
        %v256 = vpop.xlane.xlu0 %255
        %v257 = vrot.slane %v256, 4
        %v258 = vadd.f32 %v256, %v257
        %v259 = vrot.slane %v258, 2
        %v260 = vadd.f32 %v258, %v259
        %v261 = vrot.slane %v260, 1
        %v262 = vadd.f32 %v260, %v261
        %s263 = vtos %v262
        %v264 = vsel %vm246, 1, 0
        %v265 = vcvt.s32.f32 %v264
        %v266 = vsel %vm247, %v265, 0.0
        %267 = vadd.xlane.f32.xlu0 %v266
        %v268 = vpop.xlane.xlu0 %267
        %v269 = vrot.slane %v268, 4
        %v270 = vadd.f32 %v268, %v269
        %v271 = vrot.slane %v270, 2
        %v272 = vadd.f32 %v270, %v271
        %v273 = vrot.slane %v272, 1
        %v274 = vadd.f32 %v272, %v273
        %s275 = vtos %v274
        %vm276 = vcmp.eq.s32.totalorder %v227, 0
        %v277 = vsel %vm276, %v240, 0.0
        %v278 = vsel %vm247, %v277, 0.0
        %279 = vadd.xlane.f32.xlu0 %v278
        %v280 = vpop.xlane.xlu0 %279
        %v281 = vrot.slane %v280, 4
        %v282 = vadd.f32 %v280, %v281
        %v283 = vrot.slane %v282, 2
        %v284 = vadd.f32 %v282, %v283
        %v285 = vrot.slane %v284, 1
        %v286 = vadd.f32 %v284, %v285
        %s287 = vtos %v286
        %s288 = sadd.f32 %s287, 0.0
        %vm289 = vcmp.eq.s32.totalorder %v227, 1
        %v290 = vsel %vm289, %v241, 0.0
        %v291 = vsel %vm247, %v290, 0.0
        %292 = vadd.xlane.f32.xlu0 %v291
        %v293 = vpop.xlane.xlu0 %292
        %v294 = vrot.slane %v293, 4
        %v295 = vadd.f32 %v293, %v294
        %v296 = vrot.slane %v295, 2
        %v297 = vadd.f32 %v295, %v296
        %v298 = vrot.slane %v297, 1
        %v299 = vadd.f32 %v297, %v298
        %s300 = vtos %v299
        %s301 = sadd.f32 %s288, %s300
        %vm302 = vcmp.eq.s32.totalorder %v227, 2
        %v303 = vsel %vm302, %v242, 0.0
        %v304 = vsel %vm247, %v303, 0.0
        %305 = vadd.xlane.f32.xlu0 %v304
        %v306 = vpop.xlane.xlu0 %305
        %v307 = vrot.slane %v306, 4
        %v308 = vadd.f32 %v306, %v307
        %v309 = vrot.slane %v308, 2
        %v310 = vadd.f32 %v308, %v309
        %v311 = vrot.slane %v310, 1
        %v312 = vadd.f32 %v310, %v311
        %s313 = vtos %v312
        %s314 = sadd.f32 %s301, %s313
        %vm315 = vcmp.eq.s32.totalorder %v227, 3
        %v316 = vsel %vm315, %v243, 0.0
        %v317 = vsel %vm247, %v316, 0.0
        %318 = vadd.xlane.f32.xlu0 %v317
        %v319 = vpop.xlane.xlu0 %318
        %v320 = vrot.slane %v319, 4
        %v321 = vadd.f32 %v319, %v320
        %v322 = vrot.slane %v321, 2
        %v323 = vadd.f32 %v321, %v322
        %v324 = vrot.slane %v323, 1
        %v325 = vadd.f32 %v323, %v324
        %s326 = vtos %v325
        %s327 = sadd.f32 %s314, %s326
        %v328 = vlaneseq
        %v329 = vshrl.u32 %v328, 7
        %vm330 = vcmp.eq.s32.totalorder %v329, 0
        %vm331 = vcmp.eq.s32.totalorder %v329, 1
        %vm332 = vcmp.eq.s32.totalorder %v329, 2
        %v333 = vstv %s275
        %v334 = vsel %vm332, %v333, 0.0
        %v335 = vstv %s263
        %v336 = vsel %vm331, %v335, %v334
        %v337 = vstv %s327
        %v338 = vsel %vm330, %v337, %v336
        %339 = vst [vmem:[%s222] sm:$0xff] %v338
        %s340 = sand.u32 %s100, 1
        %s341 = scalar_lea.sflag [#allocation4], %s340
        %s342 = sand.u32 %s100, 1
        %s343 = smul.addr %s342, 8
        %s344 = scalar_lea.vmem [#allocation7], %s343
        // Predicated region
        $region37: #{tpu_custom_call.1} parent=27 // pred_check
          %p345 = pneg %p110
        $region38: #{tpu_custom_call.1} parent=27 // pred_check_branch
          %347 = sbr.rel (%p345) target = $region40
        $region39: #{tpu_custom_call.1} parent=27 // pred_region
          %349 = vsyncadd %s341, 0
          %s350 = sadd.s32 %s27, %s26
          %s351 = smul.addr %s350, 8
          %s352 = scalar_lea.hbm %s2, %s351
          %s354 = sshll.u32 %s344, 4
          %s355 = int_to_ptr.vmem [resolvable:$true] %s354
          %s356 = sshll.u32 %s352, 4
          %s357 = int_to_ptr.hbm [resolvable:$true] %s356
          %359 = dma.vmem_to_hbm [thread:$0]  %s355, 128, %s357, %s341
        $region40: #{tpu_custom_call.1} parent=27 // pred_fallthru
          _
      $region28: #{tpu_custom_call.1} parent=5 // pred_fallthru
        _
      %p360 = scmp.le.s32.totalorder 2, %s17
      // Predicated region
      $region41: #{tpu_custom_call.1} parent=5 // pred_check
        %p361 = pneg %p360
      $region42: #{tpu_custom_call.1} parent=5 // pred_check_branch
        %363 = sbr.rel (%p361) target = $region44
      $region43: #{tpu_custom_call.1} parent=5 // pred_region
        %s364 = ssub.s32 %s17, 2
        // Predicated region
        $region45: #{tpu_custom_call.1} parent=43 // pred_check
          %p365 = pneg %p116
        $region46: #{tpu_custom_call.1} parent=43 // pred_check_branch
          %367 = sbr.rel (%p365) target = $region48
        $region47: #{tpu_custom_call.1} parent=43 // pred_region
          %s368 = sand.u32 %s101, 1
          %s369 = scalar_lea.sflag [#allocation4], %s368
          %s370 = sand.u32 %s101, 1
          %s371 = smul.addr %s370, 8
          %s372 = scalar_lea.vmem [#allocation7], %s371
          %374 = dma.done %s369, 128
        $region48: #{tpu_custom_call.1} parent=43 // pred_fallthru
          _
      $region44: #{tpu_custom_call.1} parent=5 // pred_fallthru
        _
    $region6: #{tpu_custom_call.1} parent=1 // loop_footer
      %s21 = sadd.s32 1, %s17
    $region7: #{tpu_custom_call.1} parent=1 // loop_footer_branch
      %16 = sbr.rel target = $region3
    $region8: #{tpu_custom_call.1} parent=1 // loop_exit
      _
    %375 = vsyncpa [#allocation3], 1
    %s376 = scalar_lea.sflag [#allocation3], 1
    %377 = vsyncpa %s376, 1
    %378 = vsyncpa [#allocation6], 1
    %s379 = scalar_lea.sflag [#allocation6], 1
    %380 = vsyncpa %s379, 1
    %381 = vsyncpa [#allocation4], 1
    %s382 = scalar_lea.sflag [#allocation4], 1
    %383 = vsyncpa %s382, 1

</llo_original>
